<compile_context>
chip_gen: v7x
topology: tpu7x:2x2x1
jax: 0.10.0
libtpu: 0.0.40
codegen_flags: <defaults>
</compile_context>

<pallas_src>
import functools

import jax
import jax.numpy as jnp
from jax.experimental import pallas as pl
from jax.experimental.pallas import tpu as pltpu


def _sigmoid(t):
    # sigmoid(t) == 0.5 * tanh(0.5 * t) + 0.5  (exact; single EUP op, no divide)
    return 0.5 * jnp.tanh(0.5 * t) + 0.5


def sa_kernel(w1_ref, b1_ref, w2_ref, b2_ref, x_ref, o_ref, pad_ref,
              *, C, H, W, Bt, P):
    # x_ref / o_ref block: (Bt, C, H*W) in VMEM (lane-dense last dim)
    # w1_ref: (18,) SMEM  (Conv3x3, 2 in-ch -> 1 out-ch, row-major [ic, kh, kw])
    # b1_ref: (1,)  SMEM
    # w2_ref: (C, 1) VMEM (Conv1x1, 1 in-ch -> C out-ch)
    # b2_ref: (C, 1) VMEM
    # pad_ref: (2, Bt, 2*P + H*W) VMEM scratch (zero-padded pooled planes)
    HW = H * W

    xb = x_ref[...]                                            # (Bt, C, HW), native dtype
    # Channel pooling without a full-block f32 temp: max is order-preserving in
    # the native dtype; the mean accumulates in f32 via the reduction dtype.
    max_pool = jnp.max(xb, axis=1).astype(jnp.float32)         # (Bt, HW)
    avg_pool = jnp.sum(xb, axis=1, dtype=jnp.float32) * jnp.float32(1.0 / C)

    # Zero only the pad columns; the interior [P, P+HW) is overwritten below.
    pad_ref[:, :, 0:P] = jnp.zeros((2, Bt, P), jnp.float32)
    pad_ref[:, :, P + HW:2 * P + HW] = jnp.zeros((2, Bt, P), jnp.float32)
    pad_ref[0, :, P:P + HW] = max_pool
    pad_ref[1, :, P:P + HW] = avg_pool

    # Column-edge masks. Row edges (h +/- 1 out of range) are handled by the
    # zero padding since rows are contiguous in the flattened layout.
    col = jax.lax.broadcasted_iota(jnp.int32, (1, HW), 1) % W
    not_left = col > 0
    not_right = col < (W - 1)

    # Conv2d(2 -> 1, kernel 3x3, padding 1) as 18 shifted multiply-adds on the
    # flattened (Bt, HW) planes.
    z = jnp.full((Bt, HW), b1_ref[0], jnp.float32)
    for ic in range(2):
        for dh in (-1, 0, 1):
            for dw in (-1, 0, 1):
                w = w1_ref[ic * 9 + (dh + 1) * 3 + (dw + 1)]
                start = P + dh * W + dw
                tap = pad_ref[ic, :, start:start + HW]          # (Bt, HW)
                if dw == -1:
                    tap = jnp.where(not_left, tap, 0.0)
                elif dw == 1:
                    tap = jnp.where(not_right, tap, 0.0)
                z = z + w * tap

    # SiLU
    z = z * _sigmoid(z)

    # Conv2d(1 -> C, 1x1) + Sigmoid + gate. The (C,1)->(C,HW) broadcasts of the
    # 1x1 weights/bias are hoisted out of the per-batch loop (no CSE in JAX).
    w2 = jnp.broadcast_to(w2_ref[...].astype(jnp.float32), (C, HW))
    b2 = jnp.broadcast_to(b2_ref[...].astype(jnp.float32), (C, HW))
    for bi in range(Bt):                                        # Bt is small and static
        attn = _sigmoid(w2 * z[bi:bi + 1, :] + b2)              # (C, HW) f32
        # Gate multiply in the native dtype (bf16-native on v6e/v7x; f32 path
        # identical to before for f32 inputs).
        o_ref[bi] = x_ref[bi] * attn.astype(o_ref.dtype)


def sa_forward(x, w1, b1, w2, b2):
    """x: (B, C, H, W); w1: (1,2,3,3); b1: (1,); w2: (C,1,1,1); b2: (C,)."""
    B, C, H, W = x.shape
    HW = H * W
    # Lane padding for the flattened 3x3-conv taps (must be >= W + 1).
    P = (W // 128 + 1) * 128
    itemsize = jnp.dtype(x.dtype).itemsize

    # Generation-aware VMEM budget (64 MiB/TC on v7x vs 128 MiB on v5e/v6e).
    try:
        vmem_cap = int(pltpu.get_tpu_info().vmem_capacity_bytes)
    except Exception:
        vmem_cap = 64 << 20          # conservative fallback (v7x per-TC size)
    vmem_budget = int(0.85 * vmem_cap)

    def est_vmem(bt):
        blk = bt * C * HW * itemsize
        pooled = 4 * bt * HW * 4                    # max/avg/z/silu f32 planes
        pad_scr = 2 * bt * (2 * P + HW) * 4
        gate = 3 * C * HW * 4                       # w2/b2 broadcasts + attn
        return 4 * blk + pooled + pad_scr + gate + (2 << 20)

    # Block-size target ~3 MiB/step (amortize per-step overhead); keep the grid
    # >= 2 steps when B > 1 so both TensorCores are used on v7x megacore.
    bt = max(1, (3 << 20) // max(1, C * HW * itemsize))
    bt = min(bt, B)
    if B > 1:
        bt = min(bt, pl.cdiv(B, 2))
    while bt > 1 and est_vmem(bt) > vmem_budget:
        bt -= 1
    Bt = bt
    # TODO(synk): C-tiled two-pass grid when est_vmem(1) > vmem_budget (see top).

    Bpad = pl.cdiv(B, Bt) * Bt
    x_flat = x.reshape(B, C, HW)
    if Bpad != B:
        x_flat = jnp.pad(x_flat, ((0, Bpad - B), (0, 0), (0, 0)))

    vmem_limit = int(min(max(est_vmem(Bt), 8 << 20), vmem_budget))

    kernel = functools.partial(sa_kernel, C=C, H=H, W=W, Bt=Bt, P=P)
    smem_spec = pl.BlockSpec(memory_space=pltpu.MemorySpace.SMEM)

    cost = pl.CostEstimate(
        flops=12 * Bpad * C * HW,
        transcendentals=Bpad * (C + 2) * HW,
        bytes_accessed=2 * Bpad * C * HW * itemsize,
    )

    out_flat = pl.pallas_call(
        kernel,
        out_shape=jax.ShapeDtypeStruct((Bpad, C, HW), x.dtype),
        grid=(Bpad // Bt,),
        in_specs=[
            smem_spec,                                        # w1 (18,)
            smem_spec,                                        # b1 (1,)
            pl.BlockSpec((C, 1), lambda b: (0, 0)),           # w2 (C, 1) VMEM
            pl.BlockSpec((C, 1), lambda b: (0, 0)),           # b2 (C, 1) VMEM
            pl.BlockSpec((Bt, C, HW), lambda b: (b, 0, 0)),   # x
        ],
        out_specs=pl.BlockSpec((Bt, C, HW), lambda b: (b, 0, 0)),
        scratch_shapes=[pltpu.VMEM((2, Bt, 2 * P + HW), jnp.float32)],
        compiler_params=pltpu.CompilerParams(
            dimension_semantics=("parallel",),
            vmem_limit_bytes=vmem_limit),
        cost_estimate=cost,
    )(w1.reshape(-1).astype(jnp.float32),
      b1.astype(jnp.float32),
      w2.reshape(C, 1).astype(jnp.float32),
      b2.reshape(C, 1).astype(jnp.float32),
      x_flat)

    return out_flat[:B].reshape(B, C, H, W)


def sa_reference(x, w1, b1, w2, b2):
    """Pure-JAX reference matching the PyTorch module."""
    max_pool = jnp.max(x, axis=1, keepdims=True)
    avg_pool = jnp.mean(x, axis=1, keepdims=True)
    inp = jnp.concatenate([max_pool, avg_pool], axis=1)      # (B, 2, H, W)
    z = jax.lax.conv_general_dilated(
        inp, w1, window_strides=(1, 1), padding=((1, 1), (1, 1)),
        dimension_numbers=("NCHW", "OIHW", "NCHW")) + b1.reshape(1, 1, 1, 1)
    z = z * jax.nn.sigmoid(z)                                # SiLU
    a = jax.lax.conv_general_dilated(
        z, w2, window_strides=(1, 1), padding="VALID",
        dimension_numbers=("NCHW", "OIHW", "NCHW")) + b2.reshape(1, -1, 1, 1)
    a = jax.nn.sigmoid(a)
    return x * a


if __name__ == "__main__":
    B, C, H, W = 2, 4, 16, 16

    key = jax.random.PRNGKey(0)
    kx, k1, k2, k3, k4 = jax.random.split(key, 5)

    x = jax.random.normal(kx, (B, C, H, W), jnp.float32)
    # Deterministic synthetic parameters (shapes from nn.Conv2d in __init__).
    w1 = 0.1 * jax.random.normal(k1, (1, 2, 3, 3), jnp.float32)   # Conv2d(2,1,3,pad=1)
    b1 = 0.1 * jax.random.normal(k2, (1,), jnp.float32)
    w2 = 0.1 * jax.random.normal(k3, (C, 1, 1, 1), jnp.float32)   # Conv2d(1,C,1)
    b2 = 0.1 * jax.random.normal(k4, (C,), jnp.float32)

    out = jax.block_until_ready(sa_forward(x, w1, b1, w2, b2))

    ref = sa_reference(x, w1, b1, w2, b2)
    assert out.shape == (B, C, H, W)
    err = jnp.max(jnp.abs(out - ref))
    assert jnp.allclose(out, ref, atol=1e-5, rtol=1e-5), f"max abs err = {err}"

    print("KERNEL_OK")
</pallas_src>

<mosaic_0001>
module attributes {stable_mosaic.version = 11 : i64} {
  func.func @sa_kernel(%arg0: i32, %arg1: memref<18xf32, #tpu.memory_space<smem>>, %arg2: memref<1xf32, #tpu.memory_space<smem>>, %arg3: memref<4x1xf32, #tpu.memory_space<vmem>>, %arg4: memref<4x1xf32, #tpu.memory_space<vmem>>, %arg5: memref<1x4x256xf32, #tpu.memory_space<vmem>>, %arg6: memref<1x4x256xf32, #tpu.memory_space<vmem>>, %arg7: memref<2x1x512xf32, #tpu.memory_space<vmem>>) attributes {dimension_semantics = [#tpu.dimension_semantics<parallel>], iteration_bounds = array<i64: 2>, scalar_prefetch = 0 : i64, scratch_operands = 1 : i64, tpu.core_type = #tpu.core_type<tc>, window_params = [{transform_indices = @transform_0, window_bounds = array<i64: 18>}, {transform_indices = @transform_1, window_bounds = array<i64: 1>}, {pipeline_mode = #tpu.pipeline_mode<synchronous>, transform_indices = @transform_2, window_bounds = array<i64: 4, 1>}, {pipeline_mode = #tpu.pipeline_mode<synchronous>, transform_indices = @transform_3, window_bounds = array<i64: 4, 1>}, {transform_indices = @transform_4, window_bounds = array<i64: 1, 4, 256>}, {transform_indices = @transform_5, window_bounds = array<i64: 1, 4, 256>}]} {
    %c0 = arith.constant 0 : index
    %c0_0 = arith.constant 0 : index
    %c0_1 = arith.constant 0 : index
    %0 = vector.load %arg5[%c0, %c0_0, %c0_1] : memref<1x4x256xf32, #tpu.memory_space<vmem>>, vector<1x4x256xf32>
    %cst = arith.constant dense<0xFF800000> : vector<1x256xf32>
    %1 = vector.multi_reduction <maximumf>, %0, %cst [1] : vector<1x4x256xf32> to vector<1x256xf32>
    %cst_2 = arith.constant dense<0.000000e+00> : vector<1x256xf32>
    %2 = vector.multi_reduction <add>, %0, %cst_2 [1] : vector<1x4x256xf32> to vector<1x256xf32>
    %cst_3 = arith.constant 2.500000e-01 : f32
    %3 = vector.broadcast %cst_3 : f32 to vector<1x256xf32>
    %4 = arith.mulf %2, %3 : vector<1x256xf32>
    %cst_4 = arith.constant 0.000000e+00 : f32
    %5 = vector.broadcast %cst_4 : f32 to vector<2x1x128xf32>
    %c0_5 = arith.constant 0 : index
    %c0_6 = arith.constant 0 : index
    %c0_7 = arith.constant 0 : index
    %6 = vector.load %arg7[%c0_5, %c0_6, %c0_7] : memref<2x1x512xf32, #tpu.memory_space<vmem>>, vector<2x1x128xf32>
    tpu.vector_store %arg7[%c0_5, %c0_6, %c0_7], %5 {strides = array<i32>} : memref<2x1x512xf32, #tpu.memory_space<vmem>>, vector<2x1x128xf32>,
    %cst_8 = arith.constant 0.000000e+00 : f32
    %7 = vector.broadcast %cst_8 : f32 to vector<2x1x128xf32>
    %c0_9 = arith.constant 0 : index
    %c0_10 = arith.constant 0 : index
    %c384 = arith.constant 384 : index
    %8 = vector.load %arg7[%c0_9, %c0_10, %c384] : memref<2x1x512xf32, #tpu.memory_space<vmem>>, vector<2x1x128xf32>
    tpu.vector_store %arg7[%c0_9, %c0_10, %c384], %7 {strides = array<i32>} : memref<2x1x512xf32, #tpu.memory_space<vmem>>, vector<2x1x128xf32>,
    %c0_11 = arith.constant 0 : index
    %c0_12 = arith.constant 0 : index
    %c128 = arith.constant 128 : index
    %9 = vector.load %arg7[%c0_11, %c0_12, %c128] : memref<2x1x512xf32, #tpu.memory_space<vmem>>, vector<1x1x256xf32>
    %10 = vector.shape_cast %9 : vector<1x1x256xf32> to vector<1x256xf32>
    %11 = vector.shape_cast %1 : vector<1x256xf32> to vector<1x1x256xf32>
    tpu.vector_store %arg7[%c0_11, %c0_12, %c128], %11 {strides = array<i32>} : memref<2x1x512xf32, #tpu.memory_space<vmem>>, vector<1x1x256xf32>,
    %c1 = arith.constant 1 : index
    %c0_13 = arith.constant 0 : index
    %c128_14 = arith.constant 128 : index
    %12 = vector.load %arg7[%c1, %c0_13, %c128_14] : memref<2x1x512xf32, #tpu.memory_space<vmem>>, vector<1x1x256xf32>
    %13 = vector.shape_cast %12 : vector<1x1x256xf32> to vector<1x256xf32>
    %14 = vector.shape_cast %4 : vector<1x256xf32> to vector<1x1x256xf32>
    tpu.vector_store %arg7[%c1, %c0_13, %c128_14], %14 {strides = array<i32>} : memref<2x1x512xf32, #tpu.memory_space<vmem>>, vector<1x1x256xf32>,
    %15 = tpu.iota {dimensions = array<i32: 1>} : vector<1x256xi32>
    %c16_i32 = arith.constant 16 : i32
    %c0_i32 = arith.constant 0 : i32
    %16 = arith.cmpi eq, %c16_i32, %c0_i32 : i32
    %c1_i32 = arith.constant 1 : i32
    %17 = arith.select %16, %c1_i32, %c16_i32 : i32
    %18 = vector.broadcast %17 : i32 to vector<1x256xi32>
    %19 = arith.remsi %15, %18 : vector<1x256xi32>
    %c0_i32_15 = arith.constant 0 : i32
    %20 = vector.broadcast %c0_i32_15 : i32 to vector<1x256xi32>
    %21 = arith.cmpi ne, %19, %20 : vector<1x256xi32>
    %c0_i32_16 = arith.constant 0 : i32
    %22 = vector.broadcast %c0_i32_16 : i32 to vector<1x256xi32>
    %23 = arith.cmpi slt, %19, %22 : vector<1x256xi32>
    %c0_i32_17 = arith.constant 0 : i32
    %24 = arith.cmpi slt, %17, %c0_i32_17 : i32
    %25 = vector.broadcast %24 : i1 to vector<1x256xi1>
    %26 = vector.broadcast %25 : vector<1x256xi1> to vector<1x256xi1>
    %27 = arith.xori %23, %26 : vector<1x256xi1>
    %28 = arith.andi %27, %21 : vector<1x256xi1>
    %29 = vector.broadcast %17 : i32 to vector<1x256xi32>
    %30 = arith.addi %19, %29 : vector<1x256xi32>
    %31 = arith.select %28, %30, %19 : vector<1x256xi1>, vector<1x256xi32>
    %c0_i32_18 = arith.constant 0 : i32
    %32 = vector.broadcast %c0_i32_18 : i32 to vector<1x256xi32>
    %33 = arith.cmpi sgt, %31, %32 : vector<1x256xi32>
    %c15_i32 = arith.constant 15 : i32
    %34 = vector.broadcast %c15_i32 : i32 to vector<1x256xi32>
    %35 = arith.cmpi slt, %31, %34 : vector<1x256xi32>
    %c0_19 = arith.constant 0 : index
    %36 = memref.load %arg2[%c0_19] : memref<1xf32, #tpu.memory_space<smem>>
    %37 = vector.broadcast %36 : f32 to vector<1x256xf32>
    %c0_20 = arith.constant 0 : index
    %38 = memref.load %arg1[%c0_20] : memref<18xf32, #tpu.memory_space<smem>>
    %c0_21 = arith.constant 0 : index
    %c0_22 = arith.constant 0 : index
    %c111 = arith.constant 111 : index
    %39 = vector.load %arg7[%c0_21, %c0_22, %c111] : memref<2x1x512xf32, #tpu.memory_space<vmem>>, vector<1x1x256xf32>
    %40 = vector.shape_cast %39 : vector<1x1x256xf32> to vector<1x256xf32>
    %cst_23 = arith.constant 0.000000e+00 : f32
    %41 = vector.broadcast %cst_23 : f32 to vector<1x256xf32>
    %42 = arith.select %33, %40, %41 : vector<1x256xi1>, vector<1x256xf32>
    %43 = vector.broadcast %38 : f32 to vector<1x256xf32>
    %44 = arith.mulf %43, %42 : vector<1x256xf32>
    %45 = arith.addf %37, %44 : vector<1x256xf32>
    %c1_24 = arith.constant 1 : index
    %46 = memref.load %arg1[%c1_24] : memref<18xf32, #tpu.memory_space<smem>>
    %c0_25 = arith.constant 0 : index
    %c0_26 = arith.constant 0 : index
    %c112 = arith.constant 112 : index
    %47 = vector.load %arg7[%c0_25, %c0_26, %c112] : memref<2x1x512xf32, #tpu.memory_space<vmem>>, vector<1x1x256xf32>
    %48 = vector.shape_cast %47 : vector<1x1x256xf32> to vector<1x256xf32>
    %49 = vector.broadcast %46 : f32 to vector<1x256xf32>
    %50 = arith.mulf %49, %48 : vector<1x256xf32>
    %51 = arith.addf %45, %50 : vector<1x256xf32>
    %c2 = arith.constant 2 : index
    %52 = memref.load %arg1[%c2] : memref<18xf32, #tpu.memory_space<smem>>
    %c0_27 = arith.constant 0 : index
    %c0_28 = arith.constant 0 : index
    %c113 = arith.constant 113 : index
    %53 = vector.load %arg7[%c0_27, %c0_28, %c113] : memref<2x1x512xf32, #tpu.memory_space<vmem>>, vector<1x1x256xf32>
    %54 = vector.shape_cast %53 : vector<1x1x256xf32> to vector<1x256xf32>
    %cst_29 = arith.constant 0.000000e+00 : f32
    %55 = vector.broadcast %cst_29 : f32 to vector<1x256xf32>
    %56 = arith.select %35, %54, %55 : vector<1x256xi1>, vector<1x256xf32>
    %57 = vector.broadcast %52 : f32 to vector<1x256xf32>
    %58 = arith.mulf %57, %56 : vector<1x256xf32>
    %59 = arith.addf %51, %58 : vector<1x256xf32>
    %c3 = arith.constant 3 : index
    %60 = memref.load %arg1[%c3] : memref<18xf32, #tpu.memory_space<smem>>
    %c0_30 = arith.constant 0 : index
    %c0_31 = arith.constant 0 : index
    %c127 = arith.constant 127 : index
    %61 = vector.load %arg7[%c0_30, %c0_31, %c127] : memref<2x1x512xf32, #tpu.memory_space<vmem>>, vector<1x1x256xf32>
    %62 = vector.shape_cast %61 : vector<1x1x256xf32> to vector<1x256xf32>
    %cst_32 = arith.constant 0.000000e+00 : f32
    %63 = vector.broadcast %cst_32 : f32 to vector<1x256xf32>
    %64 = arith.select %33, %62, %63 : vector<1x256xi1>, vector<1x256xf32>
    %65 = vector.broadcast %60 : f32 to vector<1x256xf32>
    %66 = arith.mulf %65, %64 : vector<1x256xf32>
    %67 = arith.addf %59, %66 : vector<1x256xf32>
    %c4 = arith.constant 4 : index
    %68 = memref.load %arg1[%c4] : memref<18xf32, #tpu.memory_space<smem>>
    %c0_33 = arith.constant 0 : index
    %c0_34 = arith.constant 0 : index
    %c128_35 = arith.constant 128 : index
    %69 = vector.load %arg7[%c0_33, %c0_34, %c128_35] : memref<2x1x512xf32, #tpu.memory_space<vmem>>, vector<1x1x256xf32>
    %70 = vector.shape_cast %69 : vector<1x1x256xf32> to vector<1x256xf32>
    %71 = vector.broadcast %68 : f32 to vector<1x256xf32>
    %72 = arith.mulf %71, %70 : vector<1x256xf32>
    %73 = arith.addf %67, %72 : vector<1x256xf32>
    %c5 = arith.constant 5 : index
    %74 = memref.load %arg1[%c5] : memref<18xf32, #tpu.memory_space<smem>>
    %c0_36 = arith.constant 0 : index
    %c0_37 = arith.constant 0 : index
    %c129 = arith.constant 129 : index
    %75 = vector.load %arg7[%c0_36, %c0_37, %c129] : memref<2x1x512xf32, #tpu.memory_space<vmem>>, vector<1x1x256xf32>
    %76 = vector.shape_cast %75 : vector<1x1x256xf32> to vector<1x256xf32>
    %cst_38 = arith.constant 0.000000e+00 : f32
    %77 = vector.broadcast %cst_38 : f32 to vector<1x256xf32>
    %78 = arith.select %35, %76, %77 : vector<1x256xi1>, vector<1x256xf32>
    %79 = vector.broadcast %74 : f32 to vector<1x256xf32>
    %80 = arith.mulf %79, %78 : vector<1x256xf32>
    %81 = arith.addf %73, %80 : vector<1x256xf32>
    %c6 = arith.constant 6 : index
    %82 = memref.load %arg1[%c6] : memref<18xf32, #tpu.memory_space<smem>>
    %c0_39 = arith.constant 0 : index
    %c0_40 = arith.constant 0 : index
    %c143 = arith.constant 143 : index
    %83 = vector.load %arg7[%c0_39, %c0_40, %c143] : memref<2x1x512xf32, #tpu.memory_space<vmem>>, vector<1x1x256xf32>
    %84 = vector.shape_cast %83 : vector<1x1x256xf32> to vector<1x256xf32>
    %cst_41 = arith.constant 0.000000e+00 : f32
    %85 = vector.broadcast %cst_41 : f32 to vector<1x256xf32>
    %86 = arith.select %33, %84, %85 : vector<1x256xi1>, vector<1x256xf32>
    %87 = vector.broadcast %82 : f32 to vector<1x256xf32>
    %88 = arith.mulf %87, %86 : vector<1x256xf32>
    %89 = arith.addf %81, %88 : vector<1x256xf32>
    %c7 = arith.constant 7 : index
    %90 = memref.load %arg1[%c7] : memref<18xf32, #tpu.memory_space<smem>>
    %c0_42 = arith.constant 0 : index
    %c0_43 = arith.constant 0 : index
    %c144 = arith.constant 144 : index
    %91 = vector.load %arg7[%c0_42, %c0_43, %c144] : memref<2x1x512xf32, #tpu.memory_space<vmem>>, vector<1x1x256xf32>
    %92 = vector.shape_cast %91 : vector<1x1x256xf32> to vector<1x256xf32>
    %93 = vector.broadcast %90 : f32 to vector<1x256xf32>
    %94 = arith.mulf %93, %92 : vector<1x256xf32>
    %95 = arith.addf %89, %94 : vector<1x256xf32>
    %c8 = arith.constant 8 : index
    %96 = memref.load %arg1[%c8] : memref<18xf32, #tpu.memory_space<smem>>
    %c0_44 = arith.constant 0 : index
    %c0_45 = arith.constant 0 : index
    %c145 = arith.constant 145 : index
    %97 = vector.load %arg7[%c0_44, %c0_45, %c145] : memref<2x1x512xf32, #tpu.memory_space<vmem>>, vector<1x1x256xf32>
    %98 = vector.shape_cast %97 : vector<1x1x256xf32> to vector<1x256xf32>
    %cst_46 = arith.constant 0.000000e+00 : f32
    %99 = vector.broadcast %cst_46 : f32 to vector<1x256xf32>
    %100 = arith.select %35, %98, %99 : vector<1x256xi1>, vector<1x256xf32>
    %101 = vector.broadcast %96 : f32 to vector<1x256xf32>
    %102 = arith.mulf %101, %100 : vector<1x256xf32>
    %103 = arith.addf %95, %102 : vector<1x256xf32>
    %c9 = arith.constant 9 : index
    %104 = memref.load %arg1[%c9] : memref<18xf32, #tpu.memory_space<smem>>
    %c1_47 = arith.constant 1 : index
    %c0_48 = arith.constant 0 : index
    %c111_49 = arith.constant 111 : index
    %105 = vector.load %arg7[%c1_47, %c0_48, %c111_49] : memref<2x1x512xf32, #tpu.memory_space<vmem>>, vector<1x1x256xf32>
    %106 = vector.shape_cast %105 : vector<1x1x256xf32> to vector<1x256xf32>
    %cst_50 = arith.constant 0.000000e+00 : f32
    %107 = vector.broadcast %cst_50 : f32 to vector<1x256xf32>
    %108 = arith.select %33, %106, %107 : vector<1x256xi1>, vector<1x256xf32>
    %109 = vector.broadcast %104 : f32 to vector<1x256xf32>
    %110 = arith.mulf %109, %108 : vector<1x256xf32>
    %111 = arith.addf %103, %110 : vector<1x256xf32>
    %c10 = arith.constant 10 : index
    %112 = memref.load %arg1[%c10] : memref<18xf32, #tpu.memory_space<smem>>
    %c1_51 = arith.constant 1 : index
    %c0_52 = arith.constant 0 : index
    %c112_53 = arith.constant 112 : index
    %113 = vector.load %arg7[%c1_51, %c0_52, %c112_53] : memref<2x1x512xf32, #tpu.memory_space<vmem>>, vector<1x1x256xf32>
    %114 = vector.shape_cast %113 : vector<1x1x256xf32> to vector<1x256xf32>
    %115 = vector.broadcast %112 : f32 to vector<1x256xf32>
    %116 = arith.mulf %115, %114 : vector<1x256xf32>
    %117 = arith.addf %111, %116 : vector<1x256xf32>
    %c11 = arith.constant 11 : index
    %118 = memref.load %arg1[%c11] : memref<18xf32, #tpu.memory_space<smem>>
    %c1_54 = arith.constant 1 : index
    %c0_55 = arith.constant 0 : index
    %c113_56 = arith.constant 113 : index
    %119 = vector.load %arg7[%c1_54, %c0_55, %c113_56] : memref<2x1x512xf32, #tpu.memory_space<vmem>>, vector<1x1x256xf32>
    %120 = vector.shape_cast %119 : vector<1x1x256xf32> to vector<1x256xf32>
    %cst_57 = arith.constant 0.000000e+00 : f32
    %121 = vector.broadcast %cst_57 : f32 to vector<1x256xf32>
    %122 = arith.select %35, %120, %121 : vector<1x256xi1>, vector<1x256xf32>
    %123 = vector.broadcast %118 : f32 to vector<1x256xf32>
    %124 = arith.mulf %123, %122 : vector<1x256xf32>
    %125 = arith.addf %117, %124 : vector<1x256xf32>
    %c12 = arith.constant 12 : index
    %126 = memref.load %arg1[%c12] : memref<18xf32, #tpu.memory_space<smem>>
    %c1_58 = arith.constant 1 : index
    %c0_59 = arith.constant 0 : index
    %c127_60 = arith.constant 127 : index
    %127 = vector.load %arg7[%c1_58, %c0_59, %c127_60] : memref<2x1x512xf32, #tpu.memory_space<vmem>>, vector<1x1x256xf32>
    %128 = vector.shape_cast %127 : vector<1x1x256xf32> to vector<1x256xf32>
    %cst_61 = arith.constant 0.000000e+00 : f32
    %129 = vector.broadcast %cst_61 : f32 to vector<1x256xf32>
    %130 = arith.select %33, %128, %129 : vector<1x256xi1>, vector<1x256xf32>
    %131 = vector.broadcast %126 : f32 to vector<1x256xf32>
    %132 = arith.mulf %131, %130 : vector<1x256xf32>
    %133 = arith.addf %125, %132 : vector<1x256xf32>
    %c13 = arith.constant 13 : index
    %134 = memref.load %arg1[%c13] : memref<18xf32, #tpu.memory_space<smem>>
    %c1_62 = arith.constant 1 : index
    %c0_63 = arith.constant 0 : index
    %c128_64 = arith.constant 128 : index
    %135 = vector.load %arg7[%c1_62, %c0_63, %c128_64] : memref<2x1x512xf32, #tpu.memory_space<vmem>>, vector<1x1x256xf32>
    %136 = vector.shape_cast %135 : vector<1x1x256xf32> to vector<1x256xf32>
    %137 = vector.broadcast %134 : f32 to vector<1x256xf32>
    %138 = arith.mulf %137, %136 : vector<1x256xf32>
    %139 = arith.addf %133, %138 : vector<1x256xf32>
    %c14 = arith.constant 14 : index
    %140 = memref.load %arg1[%c14] : memref<18xf32, #tpu.memory_space<smem>>
    %c1_65 = arith.constant 1 : index
    %c0_66 = arith.constant 0 : index
    %c129_67 = arith.constant 129 : index
    %141 = vector.load %arg7[%c1_65, %c0_66, %c129_67] : memref<2x1x512xf32, #tpu.memory_space<vmem>>, vector<1x1x256xf32>
    %142 = vector.shape_cast %141 : vector<1x1x256xf32> to vector<1x256xf32>
    %cst_68 = arith.constant 0.000000e+00 : f32
    %143 = vector.broadcast %cst_68 : f32 to vector<1x256xf32>
    %144 = arith.select %35, %142, %143 : vector<1x256xi1>, vector<1x256xf32>
    %145 = vector.broadcast %140 : f32 to vector<1x256xf32>
    %146 = arith.mulf %145, %144 : vector<1x256xf32>
    %147 = arith.addf %139, %146 : vector<1x256xf32>
    %c15 = arith.constant 15 : index
    %148 = memref.load %arg1[%c15] : memref<18xf32, #tpu.memory_space<smem>>
    %c1_69 = arith.constant 1 : index
    %c0_70 = arith.constant 0 : index
    %c143_71 = arith.constant 143 : index
    %149 = vector.load %arg7[%c1_69, %c0_70, %c143_71] : memref<2x1x512xf32, #tpu.memory_space<vmem>>, vector<1x1x256xf32>
    %150 = vector.shape_cast %149 : vector<1x1x256xf32> to vector<1x256xf32>
    %cst_72 = arith.constant 0.000000e+00 : f32
    %151 = vector.broadcast %cst_72 : f32 to vector<1x256xf32>
    %152 = arith.select %33, %150, %151 : vector<1x256xi1>, vector<1x256xf32>
    %153 = vector.broadcast %148 : f32 to vector<1x256xf32>
    %154 = arith.mulf %153, %152 : vector<1x256xf32>
    %155 = arith.addf %147, %154 : vector<1x256xf32>
    %c16 = arith.constant 16 : index
    %156 = memref.load %arg1[%c16] : memref<18xf32, #tpu.memory_space<smem>>
    %c1_73 = arith.constant 1 : index
    %c0_74 = arith.constant 0 : index
    %c144_75 = arith.constant 144 : index
    %157 = vector.load %arg7[%c1_73, %c0_74, %c144_75] : memref<2x1x512xf32, #tpu.memory_space<vmem>>, vector<1x1x256xf32>
    %158 = vector.shape_cast %157 : vector<1x1x256xf32> to vector<1x256xf32>
    %159 = vector.broadcast %156 : f32 to vector<1x256xf32>
    %160 = arith.mulf %159, %158 : vector<1x256xf32>
    %161 = arith.addf %155, %160 : vector<1x256xf32>
    %c17 = arith.constant 17 : index
    %162 = memref.load %arg1[%c17] : memref<18xf32, #tpu.memory_space<smem>>
    %c1_76 = arith.constant 1 : index
    %c0_77 = arith.constant 0 : index
    %c145_78 = arith.constant 145 : index
    %163 = vector.load %arg7[%c1_76, %c0_77, %c145_78] : memref<2x1x512xf32, #tpu.memory_space<vmem>>, vector<1x1x256xf32>
    %164 = vector.shape_cast %163 : vector<1x1x256xf32> to vector<1x256xf32>
    %cst_79 = arith.constant 0.000000e+00 : f32
    %165 = vector.broadcast %cst_79 : f32 to vector<1x256xf32>
    %166 = arith.select %35, %164, %165 : vector<1x256xi1>, vector<1x256xf32>
    %167 = vector.broadcast %162 : f32 to vector<1x256xf32>
    %168 = arith.mulf %167, %166 : vector<1x256xf32>
    %169 = arith.addf %161, %168 : vector<1x256xf32>
    %cst_80 = arith.constant 5.000000e-01 : f32
    %170 = vector.broadcast %cst_80 : f32 to vector<1x256xf32>
    %171 = arith.mulf %170, %169 : vector<1x256xf32>
    %172 = math.tanh %171 : vector<1x256xf32>
    %cst_81 = arith.constant 5.000000e-01 : f32
    %173 = vector.broadcast %cst_81 : f32 to vector<1x256xf32>
    %174 = arith.mulf %173, %172 : vector<1x256xf32>
    %cst_82 = arith.constant 5.000000e-01 : f32
    %175 = vector.broadcast %cst_82 : f32 to vector<1x256xf32>
    %176 = arith.addf %174, %175 : vector<1x256xf32>
    %177 = arith.mulf %169, %176 : vector<1x256xf32>
    %c0_83 = arith.constant 0 : index
    %c0_84 = arith.constant 0 : index
    %178 = vector.load %arg3[%c0_83, %c0_84] : memref<4x1xf32, #tpu.memory_space<vmem>>, vector<4x1xf32>
    %179 = vector.shape_cast %178 : vector<4x1xf32> to vector<4x1xf32>
    %180 = vector.broadcast %179 : vector<4x1xf32> to vector<4x256xf32>
    %c0_85 = arith.constant 0 : index
    %c0_86 = arith.constant 0 : index
    %181 = vector.load %arg4[%c0_85, %c0_86] : memref<4x1xf32, #tpu.memory_space<vmem>>, vector<4x1xf32>
    %182 = vector.shape_cast %181 : vector<4x1xf32> to vector<4x1xf32>
    %183 = vector.broadcast %182 : vector<4x1xf32> to vector<4x256xf32>
    %184 = vector.broadcast %177 : vector<1x256xf32> to vector<4x256xf32>
    %185 = arith.mulf %180, %184 : vector<4x256xf32>
    %186 = arith.addf %185, %183 : vector<4x256xf32>
    %cst_87 = arith.constant 5.000000e-01 : f32
    %187 = vector.broadcast %cst_87 : f32 to vector<4x256xf32>
    %188 = arith.mulf %187, %186 : vector<4x256xf32>
    %189 = math.tanh %188 : vector<4x256xf32>
    %cst_88 = arith.constant 5.000000e-01 : f32
    %190 = vector.broadcast %cst_88 : f32 to vector<4x256xf32>
    %191 = arith.mulf %190, %189 : vector<4x256xf32>
    %cst_89 = arith.constant 5.000000e-01 : f32
    %192 = vector.broadcast %cst_89 : f32 to vector<4x256xf32>
    %193 = arith.addf %191, %192 : vector<4x256xf32>
    %c0_90 = arith.constant 0 : index
    %c0_91 = arith.constant 0 : index
    %c0_92 = arith.constant 0 : index
    %194 = vector.load %arg5[%c0_90, %c0_91, %c0_92] : memref<1x4x256xf32, #tpu.memory_space<vmem>>, vector<1x4x256xf32>
    %195 = vector.shape_cast %194 : vector<1x4x256xf32> to vector<4x256xf32>
    %196 = arith.mulf %195, %193 : vector<4x256xf32>
    %c0_93 = arith.constant 0 : index
    %c0_94 = arith.constant 0 : index
    %c0_95 = arith.constant 0 : index
    %197 = vector.load %arg6[%c0_93, %c0_94, %c0_95] : memref<1x4x256xf32, #tpu.memory_space<vmem>>, vector<1x4x256xf32>
    %198 = vector.shape_cast %197 : vector<1x4x256xf32> to vector<4x256xf32>
    %199 = vector.shape_cast %196 : vector<4x256xf32> to vector<1x4x256xf32>
    tpu.vector_store %arg6[%c0_93, %c0_94, %c0_95], %199 {strides = array<i32>} : memref<1x4x256xf32, #tpu.memory_space<vmem>>, vector<1x4x256xf32>,
    return
  }
  func.func @transform_0(%arg0: i32) -> i32 {
    %c0_i32 = arith.constant 0 : i32
    %c0_i32_0 = arith.constant 0 : i32
    return %c0_i32 : i32
  }
  func.func @transform_1(%arg0: i32) -> i32 {
    %c0_i32 = arith.constant 0 : i32
    %c0_i32_0 = arith.constant 0 : i32
    return %c0_i32 : i32
  }
  func.func @transform_2(%arg0: i32) -> (i32, i32) {
    %c0_i32 = arith.constant 0 : i32
    %c0_i32_0 = arith.constant 0 : i32
    %c0_i32_1 = arith.constant 0 : i32
    return %c0_i32, %c0_i32_0 : i32, i32
  }
  func.func @transform_3(%arg0: i32) -> (i32, i32) {
    %c0_i32 = arith.constant 0 : i32
    %c0_i32_0 = arith.constant 0 : i32
    %c0_i32_1 = arith.constant 0 : i32
    return %c0_i32, %c0_i32_0 : i32, i32
  }
  func.func @transform_4(%arg0: i32) -> (i32, i32, i32) {
    %c0_i32 = arith.constant 0 : i32
    %c0_i32_0 = arith.constant 0 : i32
    %c0_i32_1 = arith.constant 0 : i32
    return %arg0, %c0_i32, %c0_i32_0 : i32, i32, i32
  }
  func.func @transform_5(%arg0: i32) -> (i32, i32, i32) {
    %c0_i32 = arith.constant 0 : i32
    %c0_i32_0 = arith.constant 0 : i32
    %c0_i32_1 = arith.constant 0 : i32
    return %arg0, %c0_i32, %c0_i32_0 : i32, i32, i32
  }
}

</mosaic_0001>

<llo_original>
// kernel: tpu_custom_call.1
$region0: #{tpu_custom_call.1}
  #allocation0 [shape = 'u32[]', space=smem, size = 0x4, offset = 0x4, fixed_abs, tag = 'smem constant byte address 0x4 - core index']
  #allocation1 [shape = 'u32[144,128]{1,0:T(1,128)}', space=vmem, size = 0x12000, scoped, tag = 'internal scratch']
  #allocation2 [shape = 'f32[2,1,512]{2,1,0:T(1,128)}', space=vmem, size = 0x1000, scoped, tag = 'scratch operand']
  #allocation3 [shape = 'f32[1]{0:T(128)S(6)}', space=smem, size = 0x200, scoped, tag = 'scoped memory for tpu_custom_call.1']
  %s0 = inlined_call_operand.vmem [shape: f32[18], index: 0, kind: input, shape index: {}]
  %s1 = inlined_call_operand.<no memory space> [shape: f32[1], index: 1, kind: input, shape index: {}]
  %s2 = inlined_call_operand.vmem [shape: f32[4,1], index: 2, kind: input, shape index: {}]
  %s3 = inlined_call_operand.vmem [shape: f32[4,1], index: 3, kind: input, shape index: {}]
  %s4 = inlined_call_operand.vmem [shape: f32[2,4,256], index: 4, kind: input, shape index: {}]
  %s5 = inlined_call_operand.hbm [shape: f32[2,4,256], index: 5, kind: output, shape index: {}]
  %s6 = sld [smem:[#allocation0]]
  $region57: #{tpu_custom_call.1} parent=0
    _
  %s8 = ssub.s32 1, %s6
  %s9 = scalar_select 0, %s8, %s6
  %10 = sst [smem:[#allocation3]] %s1
  $region1: #{tpu_custom_call.1} parent=0
    #allocation4 [shape = 'u8[512]{0}', space=smem, size = 0x200, scoped, tag = 'input window, operand 0, single buffered']
    #allocation5 [shape = 's32[2]{0}', space=sflag, size = 0x8, scoped, tag = 'scoped memory for tpu_custom_call.1']
    #allocation6 [shape = 's32[2]{0}', space=sflag, size = 0x8, scoped, tag = 'scoped memory for tpu_custom_call.1']
    #allocation7 [shape = 'u8[8192]{0}', space=vmem, size = 0x2000, scoped, tag = 'output window, operand 0']
    %11 = vsyncpa [#allocation6], 0
    %12 = vsyncpa [#allocation5], 0
    %s13 = scalar_lea.sflag [#allocation5], 1
    %14 = vsyncpa %s13, 0
    loop: start=0, step=1, limit=4
    $region2: #{tpu_custom_call.1} parent=1 // loop_pre_header
      _
    $region3: #{tpu_custom_call.1} parent=1 // loop_header
      %s16 = sphi 0, %s20
      %p17 = scmp.ge.s32.totalorder %s16, 4
      %s24 = sphi 0, %s24
      %s26 = sphi 0, %s24
      %s27 = sphi 0, %s26
      %s41 = sphi 0, %s27
      %s45 = sphi 0, %s45
      %s47 = sphi 0, %s45
      %s48 = sphi 0, %s47
      %s62 = sphi 0, %s48
      %s66 = sphi 0, %s66
      %s68 = sphi 0, %s66
      %s69 = sphi 0, %s68
      %s83 = sphi 0, %s69
      %s87 = sphi 0, %s87
      %s89 = sphi 0, %s87
      %s90 = sphi 0, %s89
      %s104 = sphi 0, %s90
      %s110 = sphi 0, %s112
      %s113 = sphi 0, %s110
      %s114 = sphi 0, %s113
      %s130 = sphi 0, %s114
      %s136 = sphi 0, %s138
      %s139 = sphi 0, %s136
      %s140 = sphi 0, %s139
      %s156 = sphi 0, %s140
    $region4: #{tpu_custom_call.1} parent=1 // loop_header_branch
      %19 = sbr.rel (%p17) target = $region8
    $region5: #{tpu_custom_call.1} parent=1 // loop_body
      %s21 = ssub.s32 %s16, 1
      %s22 = ssub.s32 %s16, 2
      %s23 = sadd.s32 %s16, 1
      %s25 = sadd.s32 %s24, 1
      %p28 = scmp.eq.s32.totalorder %s16, 1
      %p29 = scmp.ne.s32.totalorder %s24, %s26
      %p30 = scmp.eq.s32.totalorder %s16, 0
      %p31 = por %p29, %p30
      %p32 = scmp.ne.s32.totalorder %s24, %s26
      %p33 = scmp.eq.s32.totalorder %s21, 1
      %p34 = por %p32, %p33
      %p35 = scmp.ne.s32.totalorder %s26, %s27
      %p36 = scmp.eq.s32.totalorder %s21, 0
      %p37 = por %p35, %p36
      %p38 = scmp.ne.s32.totalorder %s26, %s27
      %p39 = scmp.eq.s32.totalorder %s22, 1
      %p40 = por %p38, %p39
      %p42 = scmp.ne.s32.totalorder %s27, %s41
      %p43 = scmp.eq.s32.totalorder %s22, 0
      %p44 = por %p42, %p43
      %s46 = sadd.s32 %s45, 1
      %p49 = scmp.eq.s32.totalorder %s16, 1
      %p50 = scmp.ne.s32.totalorder %s45, %s47
      %p51 = scmp.eq.s32.totalorder %s16, 0
      %p52 = por %p50, %p51
      %p53 = scmp.ne.s32.totalorder %s45, %s47
      %p54 = scmp.eq.s32.totalorder %s21, 1
      %p55 = por %p53, %p54
      %p56 = scmp.ne.s32.totalorder %s47, %s48
      %p57 = scmp.eq.s32.totalorder %s21, 0
      %p58 = por %p56, %p57
      %p59 = scmp.ne.s32.totalorder %s47, %s48
      %p60 = scmp.eq.s32.totalorder %s22, 1
      %p61 = por %p59, %p60
      %p63 = scmp.ne.s32.totalorder %s48, %s62
      %p64 = scmp.eq.s32.totalorder %s22, 0
      %p65 = por %p63, %p64
      %s67 = sadd.s32 %s66, 1
      %p70 = scmp.eq.s32.totalorder %s16, 1
      %p71 = scmp.ne.s32.totalorder %s66, %s68
      %p72 = scmp.eq.s32.totalorder %s16, 0
      %p73 = por %p71, %p72
      %p74 = scmp.ne.s32.totalorder %s66, %s68
      %p75 = scmp.eq.s32.totalorder %s21, 1
      %p76 = por %p74, %p75
      %p77 = scmp.ne.s32.totalorder %s68, %s69
      %p78 = scmp.eq.s32.totalorder %s21, 0
      %p79 = por %p77, %p78
      %p80 = scmp.ne.s32.totalorder %s68, %s69
      %p81 = scmp.eq.s32.totalorder %s22, 1
      %p82 = por %p80, %p81
      %p84 = scmp.ne.s32.totalorder %s69, %s83
      %p85 = scmp.eq.s32.totalorder %s22, 0
      %p86 = por %p84, %p85
      %s88 = sadd.s32 %s87, 1
      %p91 = scmp.eq.s32.totalorder %s16, 1
      %p92 = scmp.ne.s32.totalorder %s87, %s89
      %p93 = scmp.eq.s32.totalorder %s16, 0
      %p94 = por %p92, %p93
      %p95 = scmp.ne.s32.totalorder %s87, %s89
      %p96 = scmp.eq.s32.totalorder %s21, 1
      %p97 = por %p95, %p96
      %p98 = scmp.ne.s32.totalorder %s89, %s90
      %p99 = scmp.eq.s32.totalorder %s21, 0
      %p100 = por %p98, %p99
      %p101 = scmp.ne.s32.totalorder %s89, %s90
      %p102 = scmp.eq.s32.totalorder %s22, 1
      %p103 = por %p101, %p102
      %p105 = scmp.ne.s32.totalorder %s90, %s104
      %p106 = scmp.eq.s32.totalorder %s22, 0
      %p107 = por %p105, %p106
      %s108 = ssub.s32 %s16, %s23
      %p109 = scmp.eq.s32.totalorder %s108, 0
      %s111 = sadd.s32 %s110, 1
      %s112 = scalar_select %p109, %s110, %s111
      %p115 = pneg %p109
      %p116 = scmp.eq.s32.totalorder %s16, 1
      %p117 = por %p115, %p116
      %p118 = scmp.ne.s32.totalorder %s110, %s113
      %p119 = scmp.eq.s32.totalorder %s16, 0
      %p120 = por %p118, %p119
      %p121 = scmp.ne.s32.totalorder %s110, %s113
      %p122 = scmp.eq.s32.totalorder %s21, 1
      %p123 = por %p121, %p122
      %p124 = scmp.ne.s32.totalorder %s113, %s114
      %p125 = scmp.eq.s32.totalorder %s21, 0
      %p126 = por %p124, %p125
      %p127 = scmp.ne.s32.totalorder %s113, %s114
      %p128 = scmp.eq.s32.totalorder %s22, 1
      %p129 = por %p127, %p128
      %p131 = scmp.ne.s32.totalorder %s114, %s130
      %p132 = scmp.eq.s32.totalorder %s22, 0
      %p133 = por %p131, %p132
      %s134 = ssub.s32 %s16, %s23
      %p135 = scmp.eq.s32.totalorder %s134, 0
      %s137 = sadd.s32 %s136, 1
      %s138 = scalar_select %p135, %s136, %s137
      %p141 = pneg %p135
      %p142 = scmp.eq.s32.totalorder %s16, 1
      %p143 = por %p141, %p142
      %p144 = scmp.ne.s32.totalorder %s136, %s139
      %p145 = scmp.eq.s32.totalorder %s16, 0
      %p146 = por %p144, %p145
      %p147 = scmp.ne.s32.totalorder %s136, %s139
      %p148 = scmp.eq.s32.totalorder %s21, 1
      %p149 = por %p147, %p148
      %p150 = scmp.ne.s32.totalorder %s139, %s140
      %p151 = scmp.eq.s32.totalorder %s21, 0
      %p152 = por %p150, %p151
      %p153 = scmp.ne.s32.totalorder %s139, %s140
      %p154 = scmp.eq.s32.totalorder %s22, 1
      %p155 = por %p153, %p154
      %p157 = scmp.ne.s32.totalorder %s140, %s156
      %p158 = scmp.eq.s32.totalorder %s22, 0
      %p159 = por %p157, %p158
      %p160 = scmp.le.s32.totalorder 1, %s16
      %p161 = scmp.lt.s32.totalorder %s16, 3
      %p162 = pnand %p160, %p161
      %p163 = pneg %p162
      // Predicated region
      $region9: #{tpu_custom_call.1} parent=5 // pred_check
        _
      $region10: #{tpu_custom_call.1} parent=5 // pred_check_branch
        %165 = sbr.rel (%p162) target = $region12
      $region11: #{tpu_custom_call.1} parent=5 // pred_region
        %s166 = ssub.s32 %s16, 1
        // Predicated region
        $region13: #{tpu_custom_call.1} parent=11 // pred_check
          %p167 = pneg %p37
        $region14: #{tpu_custom_call.1} parent=11 // pred_check_branch
          %169 = sbr.rel (%p167) target = $region16
        $region15: #{tpu_custom_call.1} parent=11 // pred_region
          %s171 = ssub.s32 16, 16
          %172 = vsyncadd [#allocation6], %s171
          %s174 = sshll.u32 %s0, 4
          %s175 = int_to_ptr.vmem [resolvable:$true] %s174
          %177 = dma.vmem_to_smem %s175, 16, [#allocation4], [#allocation6]
        $region16: #{tpu_custom_call.1} parent=11 // pred_fallthru
          _
        // Predicated region
        $region17: #{tpu_custom_call.1} parent=11 // pred_check
          %p178 = pneg %p58
        $region18: #{tpu_custom_call.1} parent=11 // pred_check_branch
          %180 = sbr.rel (%p178) target = $region20
        $region19: #{tpu_custom_call.1} parent=11 // pred_region
          _
        $region20: #{tpu_custom_call.1} parent=11 // pred_fallthru
          _
        // Predicated region
        $region21: #{tpu_custom_call.1} parent=11 // pred_check
          %p181 = pneg %p79
        $region22: #{tpu_custom_call.1} parent=11 // pred_check_branch
          %183 = sbr.rel (%p181) target = $region24
        $region23: #{tpu_custom_call.1} parent=11 // pred_region
          _
        $region24: #{tpu_custom_call.1} parent=11 // pred_fallthru
          _
        // Predicated region
        $region25: #{tpu_custom_call.1} parent=11 // pred_check
          %p184 = pneg %p100
        $region26: #{tpu_custom_call.1} parent=11 // pred_check_branch
          %186 = sbr.rel (%p184) target = $region28
        $region27: #{tpu_custom_call.1} parent=11 // pred_region
          _
        $region28: #{tpu_custom_call.1} parent=11 // pred_fallthru
          _
      $region12: #{tpu_custom_call.1} parent=5 // pred_fallthru
        _
      %p187 = scmp.lt.s32.totalorder %s16, 2
      // Predicated region
      $region29: #{tpu_custom_call.1} parent=5 // pred_check
        %p188 = pneg %p187
      $region30: #{tpu_custom_call.1} parent=5 // pred_check_branch
        %190 = sbr.rel (%p188) target = $region32
      $region31: #{tpu_custom_call.1} parent=5 // pred_region
        // Predicated region
        $region33: #{tpu_custom_call.1} parent=31 // pred_check
          %p191 = pneg %p120
        $region34: #{tpu_custom_call.1} parent=31 // pred_check_branch
          %193 = sbr.rel (%p191) target = $region36
        $region35: #{tpu_custom_call.1} parent=31 // pred_region
          %p194 = scmp.lt.s32.totalorder %s16, 1
          %s195 = scalar_select %p194, %s16, 1
          %s196 = smul.addr %s195, 2
          %s197 = smul.addr %s196, 4
          %s198 = scalar_lea.vmem %s4, %s197
        $region36: #{tpu_custom_call.1} parent=31 // pred_fallthru
          _
      $region32: #{tpu_custom_call.1} parent=5 // pred_fallthru
        _
      %p199 = scmp.le.s32.totalorder 1, %s16
      %p200 = scmp.lt.s32.totalorder %s16, 3
      %p201 = pnand %p199, %p200
      %p202 = pneg %p201
      // Predicated region
      $region37: #{tpu_custom_call.1} parent=5 // pred_check
        _
      $region38: #{tpu_custom_call.1} parent=5 // pred_check_branch
        %204 = sbr.rel (%p201) target = $region40
      $region39: #{tpu_custom_call.1} parent=5 // pred_region
        %s205 = ssub.s32 %s16, 1
        // Predicated region
        $region41: #{tpu_custom_call.1} parent=39 // pred_check
          %p206 = pneg %p37
        $region42: #{tpu_custom_call.1} parent=39 // pred_check_branch
          %208 = sbr.rel (%p206) target = $region44
        $region43: #{tpu_custom_call.1} parent=39 // pred_region
          %209 = dma.done [#allocation6], 16
        $region44: #{tpu_custom_call.1} parent=39 // pred_fallthru
          _
        %210 = sfence
        %p211 = pneg %p37
        %p212 = pneg %p34
        %p213 = pneg %p58
        %p214 = pneg %p55
        %p215 = pneg %p79
        %p216 = pneg %p76
        %p217 = pneg %p100
        %p218 = pneg %p97
        %p219 = scmp.lt.s32.totalorder %s21, 1
        %s220 = scalar_select %p219, %s21, 1
        %s221 = smul.addr %s220, 2
        %s222 = smul.addr %s221, 4
        %s223 = scalar_lea.vmem %s4, %s222
        %p224 = pneg %p126
        %p225 = pneg %p123
        %p226 = pneg %p152
        %p227 = pneg %p149
        %s228 = sand.u32 %s139, 1
        %s229 = scalar_lea.sflag [#allocation5], %s228
        %s230 = sand.u32 %s139, 1
        %s231 = smul.addr %s230, 8
        %s232 = scalar_lea.vmem [#allocation7], %s231
        %p233 = scmp.lt.s32.totalorder %s21, 1
        %s234 = scalar_select %p233, %s21, 1
        %s235 = smul.addr %s234, 2
        %s236 = smul.addr %s235, 4
        %s237 = scalar_lea.vmem %s4, %s236
        %v238 = vld [vmem:[%s237] sm:$0xff]
        %v240 = vcombine.high %v238, %v238
        %vm242 = vcmask 1043456
        %v243 = vsel %vm242, %v238, -inf
        %v244 = vrot.slane %v243, 4
        %v245 = vmax.f32 %v243, %v244
        %v246 = vrot.slane %v245, 2
        %v247 = vmax.f32 %v245, %v246
        %v248 = vrot.slane %v247, 1
        %v249 = vmax.f32 %v247, %v248
        %v250 = vsel %vm242, %v240, -inf
        %v251 = vrot.slane %v250, 4
        %v252 = vmax.f32 %v250, %v251
        %v253 = vrot.slane %v252, 2
        %v254 = vmax.f32 %v252, %v253
        %v255 = vrot.slane %v254, 1
        %v256 = vmax.f32 %v254, %v255
        %v257 = vsel %vm242, %v238, 0.0
        %v258 = vrot.slane %v257, 4
        %v259 = vadd.f32 %v257, %v258
        %v260 = vrot.slane %v259, 2
        %v261 = vadd.f32 %v259, %v260
        %v262 = vrot.slane %v261, 1
        %v263 = vadd.f32 %v261, %v262
        %v264 = vsel %vm242, %v240, 0.0
        %v265 = vrot.slane %v264, 4
        %v266 = vadd.f32 %v264, %v265
        %v267 = vrot.slane %v266, 2
        %v268 = vadd.f32 %v266, %v267
        %v269 = vrot.slane %v268, 1
        %v270 = vadd.f32 %v268, %v269
        %v271 = vmul.f32 %v263, 0.25
        %v272 = vmul.f32 %v270, 0.25
        %v273 = vlaneseq
        %vm274 = vcmp.ge.s32.totalorder %v273, 0
        %vm275 = vcmp.lt.s32.totalorder %v273, 128
        %vm276 = vmand %vm274, %vm275
        %277 = vst.msk [vmem:[#allocation2] sm:$0x1] %vm276, 0.0
        %278 = vst.msk [vmem:[#allocation2 + $0x4] sm:$0x1] %vm276, 0.0
        %279 = vst.msk [vmem:[#allocation2 + $0x3] sm:$0x1] %vm276, 0.0
        %280 = vst.msk [vmem:[#allocation2 + $0x7] sm:$0x1] %vm276, 0.0
        %v283 = vcombine.low %v249, %v256
        %v285 = vunpack.c.l.s4 1966171168
        %v286 = vunpack.c.0.s8 %v285
        %v287 = vlaneseq
        %v288 = vshrl.u32 %v287, 7
        %v289 = vsub.s32 %v286, %v288
        %v290 = vrot.slane %v283, %v289
        %v292 = vunpack.c.l.s4 1966171168
        %v293 = vunpack.c.0.s8 %v292
        %v294 = vlaneseq
        %v295 = vshrl.u32 %v294, 7
        %v296 = vsub.s32 %v293, %v295
        %v297 = vrot.slane %v290, %v296
        %vm299 = vcmp.lt.s32.totalorder %v273, 256
        %vm300 = vmand %vm274, %vm299
        %301 = vst.msk [vmem:[#allocation2 + $0x1] sm:$0x3] %vm300, %v297
        %v304 = vcombine.low %v271, %v272
        %v306 = vunpack.c.l.s4 1966171168
        %v307 = vunpack.c.0.s8 %v306
        %v308 = vlaneseq
        %v309 = vshrl.u32 %v308, 7
        %v310 = vsub.s32 %v307, %v309
        %v311 = vrot.slane %v304, %v310
        %v313 = vunpack.c.l.s4 1966171168
        %v314 = vunpack.c.0.s8 %v313
        %v315 = vlaneseq
        %v316 = vshrl.u32 %v315, 7
        %v317 = vsub.s32 %v314, %v316
        %v318 = vrot.slane %v311, %v317
        %s320 = scalar_lea.vmem [#allocation2], 4
        %321 = vst.msk [vmem:[%s320 + $0x1] sm:$0x3] %vm300, %v318
        %v322 = vlaneseq
        %v323 = vand.u32 %v322, 127
        %v324 = vadd.s32 %v323, 128
        %vm325 = vcmp.lt.s32.totalorder %v323, 0
        %v326 = vsub.s32 0, %v323
        %v327 = vsel %vm325, %v326, %v323
        %v328 = vshrl.u32 %v327, 4
        %v329 = vand.u32 %v327, 15
        %v330 = vsub.s32 0, %v329
        %v331 = vsel %vm325, %v330, %v329
        %vm332 = vcmp.lt.s32.totalorder %v324, 0
        %v333 = vsub.s32 0, %v324
        %v334 = vsel %vm332, %v333, %v324
        %v335 = vshrl.u32 %v334, 4
        %v336 = vand.u32 %v334, 15
        %v337 = vsub.s32 0, %v336
        %v338 = vsel %vm332, %v337, %v336
        %vm339 = vcmp.ne.s32.totalorder %v331, 0
        %vm340 = vcmp.ne.s32.totalorder %v338, 0
        %vm341 = vcmp.lt.s32.totalorder %v331, 0
        %vm342 = vcmp.lt.s32.totalorder %v338, 0
        %vm343 = vmand %vm341, %vm339
        %vm344 = vmand %vm342, %vm340
        %v345 = vadd.s32 %v331, 16
        %v346 = vadd.s32 %v338, 16
        %v347 = vsel %vm343, %v345, %v331
        %v348 = vsel %vm344, %v346, %v338
        %vm349 = vcmp.gt.s32.totalorder %v347, 0
        %vm350 = vcmp.gt.s32.totalorder %v348, 0
        %vm351 = vcmp.lt.s32.totalorder %v347, 15
        %vm352 = vcmp.lt.s32.totalorder %v348, 15
        %s353 = sld [smem:[#allocation3]]
        %v354 = vstv %s353
        %s355 = sld [smem:[#allocation4]]
        %v356 = vld [vmem:[#allocation2] sm:$0x7]
        %v358 = vlaneseq
        %v359 = vshrl.u32 %v358, 7
        %v360 = vsub.s32 0, %v359
        %v361 = vrot.slane %v356, %v360
        %v362 = vlaneseq
        %v363 = vshrl.u32 %v362, 7
        %v364 = vsub.s32 1, %v363
        %v365 = vrot.slane %v356, %v364
        %v366 = vlaneseq
        %v367 = vshrl.u32 %v366, 7
        %v368 = vsub.s32 2, %v367
        %v369 = vrot.slane %v356, %v368
        %370 = vrot.lane.b32.xlu0 %v361, 17
        %v371 = vpop.permute.xlu0 %370
        %372 = vrot.lane.b32.xlu0 %v365, 17
        %v373 = vpop.permute.xlu0 %372
        %374 = vrot.lane.b32.xlu0 %v369, 17
        %v375 = vpop.permute.xlu0 %374
        %vm376 = vcmask 138240
        %v377 = vsel %vm376, %v371, %v373
        %v378 = vsel %vm376, %v373, %v375
        %v381 = vsel %vm349, %v377, 0.0
        %v382 = vsel %vm350, %v378, 0.0
        %v383 = vstv %s355
        %v384 = vmul.f32 %v383, %v381
        %v385 = vmul.f32 %v383, %v382
        %v386 = vadd.f32 %v354, %v384
        %v387 = vadd.f32 %v354, %v385
        %s388 = sld [smem:[#allocation4 + $0x1]]
        %v389 = vstv %s388
        %v390 = vmul.f32 %v389, %v356
        %v392 = vlaneseq
        %v393 = vshrl.u32 %v392, 7
        %v394 = vsub.s32 0, %v393
        %v395 = vrot.slane %v390, %v394
        %v396 = vlaneseq
        %v397 = vshrl.u32 %v396, 7
        %v398 = vsub.s32 1, %v397
        %v399 = vrot.slane %v390, %v398
        %v400 = vlaneseq
        %v401 = vshrl.u32 %v400, 7
        %v402 = vsub.s32 2, %v401
        %v403 = vrot.slane %v390, %v402
        %404 = vrot.lane.b32.xlu0 %v395, 16
        %v405 = vpop.permute.xlu0 %404
        %406 = vrot.lane.b32.xlu0 %v399, 16
        %v407 = vpop.permute.xlu0 %406
        %408 = vrot.lane.b32.xlu0 %v403, 16
        %v409 = vpop.permute.xlu0 %408
        %vm410 = vcmask 130048
        %v411 = vsel %vm410, %v405, %v407
        %v412 = vsel %vm410, %v407, %v409
        %v415 = vadd.f32 %v386, %v411
        %v416 = vadd.f32 %v387, %v412
        %s417 = sld [smem:[#allocation4 + $0x2]]
        %418 = vrot.lane.b32.xlu0 %v361, 15
        %v419 = vpop.permute.xlu0 %418
        %420 = vrot.lane.b32.xlu0 %v365, 15
        %v421 = vpop.permute.xlu0 %420
        %422 = vrot.lane.b32.xlu0 %v369, 15
        %v423 = vpop.permute.xlu0 %422
        %vm424 = vcmask 121856
        %v425 = vsel %vm424, %v419, %v421
        %v426 = vsel %vm424, %v421, %v423
        %v429 = vsel %vm351, %v425, 0.0
        %v430 = vsel %vm352, %v426, 0.0
        %v431 = vstv %s417
        %v432 = vmul.f32 %v431, %v429
        %v433 = vmul.f32 %v431, %v430
        %v434 = vadd.f32 %v415, %v432
        %v435 = vadd.f32 %v416, %v433
        %s436 = sld [smem:[#allocation4 + $0x3]]
        %437 = vrot.lane.b32.xlu0 %v361, 1
        %v438 = vpop.permute.xlu0 %437
        %439 = vrot.lane.b32.xlu0 %v365, 1
        %v440 = vpop.permute.xlu0 %439
        %441 = vrot.lane.b32.xlu0 %v369, 1
        %v442 = vpop.permute.xlu0 %441
        %vm443 = vcmask 7168
        %v444 = vsel %vm443, %v438, %v440
        %v445 = vsel %vm443, %v440, %v442
        %v448 = vsel %vm349, %v444, 0.0
        %v449 = vsel %vm350, %v445, 0.0
        %v450 = vstv %s436
        %v451 = vmul.f32 %v450, %v448
        %v452 = vmul.f32 %v450, %v449
        %v453 = vadd.f32 %v434, %v451
        %v454 = vadd.f32 %v435, %v452
        %s455 = sld [smem:[#allocation4 + $0x4]]
        %v456 = vld [vmem:[#allocation2 + $0x1] sm:$0x3]
        %v457 = vstv %s455
        %v458 = vmul.f32 %v457, %v456
        %v460 = vlaneseq
        %v461 = vshrl.u32 %v460, 7
        %v462 = vsub.s32 0, %v461
        %v463 = vrot.slane %v458, %v462
        %v464 = vlaneseq
        %v465 = vshrl.u32 %v464, 7
        %v466 = vsub.s32 1, %v465
        %v467 = vrot.slane %v458, %v466
        %v470 = vadd.f32 %v453, %v463
        %v471 = vadd.f32 %v454, %v467
        %s472 = sld [smem:[#allocation4 + $0x5]]
        %v473 = vld [vmem:[#allocation2 + $0x1] sm:$0x7]
        %v475 = vlaneseq
        %v476 = vshrl.u32 %v475, 7
        %v477 = vsub.s32 0, %v476
        %v478 = vrot.slane %v473, %v477
        %v479 = vlaneseq
        %v480 = vshrl.u32 %v479, 7
        %v481 = vsub.s32 1, %v480
        %v482 = vrot.slane %v473, %v481
        %v483 = vlaneseq
        %v484 = vshrl.u32 %v483, 7
        %v485 = vsub.s32 2, %v484
        %v486 = vrot.slane %v473, %v485
        %487 = vrot.lane.b32.xlu0 %v478, 127
        %v488 = vpop.permute.xlu0 %487
        %489 = vrot.lane.b32.xlu0 %v482, 127
        %v490 = vpop.permute.xlu0 %489
        %491 = vrot.lane.b32.xlu0 %v486, 127
        %v492 = vpop.permute.xlu0 %491
        %vm493 = vcmask 1039360
        %v494 = vsel %vm493, %v488, %v490
        %v495 = vsel %vm493, %v490, %v492
        %v498 = vsel %vm351, %v494, 0.0
        %v499 = vsel %vm352, %v495, 0.0
        %v500 = vstv %s472
        %v501 = vmul.f32 %v500, %v498
        %v502 = vmul.f32 %v500, %v499
        %v503 = vadd.f32 %v470, %v501
        %v504 = vadd.f32 %v471, %v502
        %s505 = sld [smem:[#allocation4 + $0x6]]
        %506 = vrot.lane.b32.xlu0 %v478, 113
        %v507 = vpop.permute.xlu0 %506
        %508 = vrot.lane.b32.xlu0 %v482, 113
        %v509 = vpop.permute.xlu0 %508
        %510 = vrot.lane.b32.xlu0 %v486, 113
        %v511 = vpop.permute.xlu0 %510
        %vm512 = vcmask 924672
        %v513 = vsel %vm512, %v507, %v509
        %v514 = vsel %vm512, %v509, %v511
        %v517 = vsel %vm349, %v513, 0.0
        %v518 = vsel %vm350, %v514, 0.0
        %v519 = vstv %s505
        %v520 = vmul.f32 %v519, %v517
        %v521 = vmul.f32 %v519, %v518
        %v522 = vadd.f32 %v503, %v520
        %v523 = vadd.f32 %v504, %v521
        %s524 = sld [smem:[#allocation4 + $0x7]]
        %v525 = vstv %s524
        %v526 = vmul.f32 %v525, %v473
        %v528 = vlaneseq
        %v529 = vshrl.u32 %v528, 7
        %v530 = vsub.s32 0, %v529
        %v531 = vrot.slane %v526, %v530
        %v532 = vlaneseq
        %v533 = vshrl.u32 %v532, 7
        %v534 = vsub.s32 1, %v533
        %v535 = vrot.slane %v526, %v534
        %v536 = vlaneseq
        %v537 = vshrl.u32 %v536, 7
        %v538 = vsub.s32 2, %v537
        %v539 = vrot.slane %v526, %v538
        %540 = vrot.lane.b32.xlu0 %v531, 112
        %v541 = vpop.permute.xlu0 %540
        %542 = vrot.lane.b32.xlu0 %v535, 112
        %v543 = vpop.permute.xlu0 %542
        %544 = vrot.lane.b32.xlu0 %v539, 112
        %v545 = vpop.permute.xlu0 %544
        %vm546 = vcmask 916480
        %v547 = vsel %vm546, %v541, %v543
        %v548 = vsel %vm546, %v543, %v545
        %v551 = vadd.f32 %v522, %v547
        %v552 = vadd.f32 %v523, %v548
        %s553 = sld [smem:[#allocation4 + $0x8]]
        %554 = vrot.lane.b32.xlu0 %v478, 111
        %v555 = vpop.permute.xlu0 %554
        %556 = vrot.lane.b32.xlu0 %v482, 111
        %v557 = vpop.permute.xlu0 %556
        %558 = vrot.lane.b32.xlu0 %v486, 111
        %v559 = vpop.permute.xlu0 %558
        %vm560 = vcmask 908288
        %v561 = vsel %vm560, %v555, %v557
        %v562 = vsel %vm560, %v557, %v559
        %v565 = vsel %vm351, %v561, 0.0
        %v566 = vsel %vm352, %v562, 0.0
        %v567 = vstv %s553
        %v568 = vmul.f32 %v567, %v565
        %v569 = vmul.f32 %v567, %v566
        %v570 = vadd.f32 %v551, %v568
        %v571 = vadd.f32 %v552, %v569
        %s572 = sld [smem:[#allocation4 + $0x9]]
        %v573 = vld [vmem:[%s320] sm:$0x7]
        %v575 = vlaneseq
        %v576 = vshrl.u32 %v575, 7
        %v577 = vsub.s32 0, %v576
        %v578 = vrot.slane %v573, %v577
        %v579 = vlaneseq
        %v580 = vshrl.u32 %v579, 7
        %v581 = vsub.s32 1, %v580
        %v582 = vrot.slane %v573, %v581
        %v583 = vlaneseq
        %v584 = vshrl.u32 %v583, 7
        %v585 = vsub.s32 2, %v584
        %v586 = vrot.slane %v573, %v585
        %587 = vrot.lane.b32.xlu0 %v578, 17
        %v588 = vpop.permute.xlu0 %587
        %589 = vrot.lane.b32.xlu0 %v582, 17
        %v590 = vpop.permute.xlu0 %589
        %591 = vrot.lane.b32.xlu0 %v586, 17
        %v592 = vpop.permute.xlu0 %591
        %v593 = vsel %vm376, %v588, %v590
        %v594 = vsel %vm376, %v590, %v592
        %v597 = vsel %vm349, %v593, 0.0
        %v598 = vsel %vm350, %v594, 0.0
        %v599 = vstv %s572
        %v600 = vmul.f32 %v599, %v597
        %v601 = vmul.f32 %v599, %v598
        %v602 = vadd.f32 %v570, %v600
        %v603 = vadd.f32 %v571, %v601
        %s604 = sld [smem:[#allocation4 + $0xa]]
        %v605 = vstv %s604
        %v606 = vmul.f32 %v605, %v573
        %v608 = vlaneseq
        %v609 = vshrl.u32 %v608, 7
        %v610 = vsub.s32 0, %v609
        %v611 = vrot.slane %v606, %v610
        %v612 = vlaneseq
        %v613 = vshrl.u32 %v612, 7
        %v614 = vsub.s32 1, %v613
        %v615 = vrot.slane %v606, %v614
        %v616 = vlaneseq
        %v617 = vshrl.u32 %v616, 7
        %v618 = vsub.s32 2, %v617
        %v619 = vrot.slane %v606, %v618
        %620 = vrot.lane.b32.xlu0 %v611, 16
        %v621 = vpop.permute.xlu0 %620
        %622 = vrot.lane.b32.xlu0 %v615, 16
        %v623 = vpop.permute.xlu0 %622
        %624 = vrot.lane.b32.xlu0 %v619, 16
        %v625 = vpop.permute.xlu0 %624
        %v626 = vsel %vm410, %v621, %v623
        %v627 = vsel %vm410, %v623, %v625
        %v630 = vadd.f32 %v602, %v626
        %v631 = vadd.f32 %v603, %v627
        %s632 = sld [smem:[#allocation4 + $0xb]]
        %633 = vrot.lane.b32.xlu0 %v578, 15
        %v634 = vpop.permute.xlu0 %633
        %635 = vrot.lane.b32.xlu0 %v582, 15
        %v636 = vpop.permute.xlu0 %635
        %637 = vrot.lane.b32.xlu0 %v586, 15
        %v638 = vpop.permute.xlu0 %637
        %v639 = vsel %vm424, %v634, %v636
        %v640 = vsel %vm424, %v636, %v638
        %v643 = vsel %vm351, %v639, 0.0
        %v644 = vsel %vm352, %v640, 0.0
        %v645 = vstv %s632
        %v646 = vmul.f32 %v645, %v643
        %v647 = vmul.f32 %v645, %v644
        %v648 = vadd.f32 %v630, %v646
        %v649 = vadd.f32 %v631, %v647
        %s650 = sld [smem:[#allocation4 + $0xc]]
        %651 = vrot.lane.b32.xlu0 %v578, 1
        %v652 = vpop.permute.xlu0 %651
        %653 = vrot.lane.b32.xlu0 %v582, 1
        %v654 = vpop.permute.xlu0 %653
        %655 = vrot.lane.b32.xlu0 %v586, 1
        %v656 = vpop.permute.xlu0 %655
        %v657 = vsel %vm443, %v652, %v654
        %v658 = vsel %vm443, %v654, %v656
        %v661 = vsel %vm349, %v657, 0.0
        %v662 = vsel %vm350, %v658, 0.0
        %v663 = vstv %s650
        %v664 = vmul.f32 %v663, %v661
        %v665 = vmul.f32 %v663, %v662
        %v666 = vadd.f32 %v648, %v664
        %v667 = vadd.f32 %v649, %v665
        %s668 = sld [smem:[#allocation4 + $0xd]]
        %v669 = vld [vmem:[%s320 + $0x1] sm:$0x3]
        %v670 = vstv %s668
        %v671 = vmul.f32 %v670, %v669
        %v673 = vlaneseq
        %v674 = vshrl.u32 %v673, 7
        %v675 = vsub.s32 0, %v674
        %v676 = vrot.slane %v671, %v675
        %v677 = vlaneseq
        %v678 = vshrl.u32 %v677, 7
        %v679 = vsub.s32 1, %v678
        %v680 = vrot.slane %v671, %v679
        %v683 = vadd.f32 %v666, %v676
        %v684 = vadd.f32 %v667, %v680
        %s685 = sld [smem:[#allocation4 + $0xe]]
        %v686 = vld [vmem:[%s320 + $0x1] sm:$0x7]
        %v688 = vlaneseq
        %v689 = vshrl.u32 %v688, 7
        %v690 = vsub.s32 0, %v689
        %v691 = vrot.slane %v686, %v690
        %v692 = vlaneseq
        %v693 = vshrl.u32 %v692, 7
        %v694 = vsub.s32 1, %v693
        %v695 = vrot.slane %v686, %v694
        %v696 = vlaneseq
        %v697 = vshrl.u32 %v696, 7
        %v698 = vsub.s32 2, %v697
        %v699 = vrot.slane %v686, %v698
        %700 = vrot.lane.b32.xlu0 %v691, 127
        %v701 = vpop.permute.xlu0 %700
        %702 = vrot.lane.b32.xlu0 %v695, 127
        %v703 = vpop.permute.xlu0 %702
        %704 = vrot.lane.b32.xlu0 %v699, 127
        %v705 = vpop.permute.xlu0 %704
        %v706 = vsel %vm493, %v701, %v703
        %v707 = vsel %vm493, %v703, %v705
        %v710 = vsel %vm351, %v706, 0.0
        %v711 = vsel %vm352, %v707, 0.0
        %v712 = vstv %s685
        %v713 = vmul.f32 %v712, %v710
        %v714 = vmul.f32 %v712, %v711
        %v715 = vadd.f32 %v683, %v713
        %v716 = vadd.f32 %v684, %v714
        %s717 = sld [smem:[#allocation4 + $0xf]]
        %718 = vrot.lane.b32.xlu0 %v691, 113
        %v719 = vpop.permute.xlu0 %718
        %720 = vrot.lane.b32.xlu0 %v695, 113
        %v721 = vpop.permute.xlu0 %720
        %722 = vrot.lane.b32.xlu0 %v699, 113
        %v723 = vpop.permute.xlu0 %722
        %v724 = vsel %vm512, %v719, %v721
        %v725 = vsel %vm512, %v721, %v723
        %v728 = vsel %vm349, %v724, 0.0
        %v729 = vsel %vm350, %v725, 0.0
        %v730 = vstv %s717
        %v731 = vmul.f32 %v730, %v728
        %v732 = vmul.f32 %v730, %v729
        %v733 = vadd.f32 %v715, %v731
        %v734 = vadd.f32 %v716, %v732
        %s735 = sld [smem:[#allocation4 + $0x10]]
        %v736 = vstv %s735
        %v737 = vmul.f32 %v736, %v686
        %v739 = vlaneseq
        %v740 = vshrl.u32 %v739, 7
        %v741 = vsub.s32 0, %v740
        %v742 = vrot.slane %v737, %v741
        %v743 = vlaneseq
        %v744 = vshrl.u32 %v743, 7
        %v745 = vsub.s32 1, %v744
        %v746 = vrot.slane %v737, %v745
        %v747 = vlaneseq
        %v748 = vshrl.u32 %v747, 7
        %v749 = vsub.s32 2, %v748
        %v750 = vrot.slane %v737, %v749
        %751 = vrot.lane.b32.xlu0 %v742, 112
        %v752 = vpop.permute.xlu0 %751
        %753 = vrot.lane.b32.xlu0 %v746, 112
        %v754 = vpop.permute.xlu0 %753
        %755 = vrot.lane.b32.xlu0 %v750, 112
        %v756 = vpop.permute.xlu0 %755
        %v757 = vsel %vm546, %v752, %v754
        %v758 = vsel %vm546, %v754, %v756
        %v761 = vadd.f32 %v733, %v757
        %v762 = vadd.f32 %v734, %v758
        %s763 = sld [smem:[#allocation4 + $0x11]]
        %764 = vrot.lane.b32.xlu0 %v691, 111
        %v765 = vpop.permute.xlu0 %764
        %766 = vrot.lane.b32.xlu0 %v695, 111
        %v767 = vpop.permute.xlu0 %766
        %768 = vrot.lane.b32.xlu0 %v699, 111
        %v769 = vpop.permute.xlu0 %768
        %v770 = vsel %vm560, %v765, %v767
        %v771 = vsel %vm560, %v767, %v769
        %v774 = vsel %vm351, %v770, 0.0
        %v775 = vsel %vm352, %v771, 0.0
        %v776 = vstv %s763
        %v777 = vmul.f32 %v776, %v774
        %v778 = vmul.f32 %v776, %v775
        %v779 = vadd.f32 %v761, %v777
        %v780 = vadd.f32 %v762, %v778
        %v781 = vmul.f32 %v779, 0.5
        %v782 = vmul.f32 %v780, 0.5
        %v783 = vtanh.pop %v781
        %v784 = vtanh.pop %v782
        %v785 = vmul.f32 %v783, 0.5
        %v786 = vmul.f32 %v784, 0.5
        %v787 = vadd.f32 %v785, 0.5
        %v788 = vadd.f32 %v786, 0.5
        %v789 = vmul.f32 %v779, %v787
        %v790 = vmul.f32 %v780, %v788
        %v791 = vld [vmem:[%s2] sm:$0xf]
        %793 = vset.pattern.permute.xlu0 0
        %794 = vperm.xlu0 %793, %v791
        %v795 = vpop.permute.xlu0 %794
        %v797 = vld [vmem:[%s3] sm:$0xf]
        %799 = vset.pattern.permute.xlu0 0
        %800 = vperm.xlu0 %799, %v797
        %v801 = vpop.permute.xlu0 %800
        %v803 = vlaneseq
        %v804 = vshrl.u32 %v803, 7
        %v805 = vsub.s32 0, %v804
        %v806 = vrot.slane %v789, %v805
        %v807 = vlaneseq
        %v808 = vshrl.u32 %v807, 7
        %v809 = vsub.s32 0, %v808
        %v810 = vrot.slane %v790, %v809
        %v811 = vmul.f32 %v795, %v806
        %v812 = vmul.f32 %v795, %v810
        %v813 = vadd.f32 %v811, %v801
        %v814 = vadd.f32 %v812, %v801
        %v815 = vmul.f32 %v813, 0.5
        %v816 = vmul.f32 %v814, 0.5
        %v817 = vtanh.pop %v815
        %v818 = vtanh.pop %v816
        %v819 = vmul.f32 %v817, 0.5
        %v820 = vmul.f32 %v818, 0.5
        %v821 = vadd.f32 %v819, 0.5
        %v822 = vadd.f32 %v820, 0.5
        %v823 = vld [vmem:[%s237] sm:$0xff]
        %v826 = vcombine.low %v821, %v822
        %v828 = vmul.f32 %v823, %v826
        %829 = vst [vmem:[%s232] sm:$0xff] %v828
        %s830 = sand.u32 %s139, 1
        %s831 = scalar_lea.sflag [#allocation5], %s830
        %s832 = sand.u32 %s139, 1
        %s833 = smul.addr %s832, 8
        %s834 = scalar_lea.vmem [#allocation7], %s833
        // Predicated region
        $region45: #{tpu_custom_call.1} parent=39 // pred_check
          %p835 = pneg %p149
        $region46: #{tpu_custom_call.1} parent=39 // pred_check_branch
          %837 = sbr.rel (%p835) target = $region48
        $region47: #{tpu_custom_call.1} parent=39 // pred_region
          %s839 = ssub.s32 128, 128
          %840 = vsyncadd %s831, %s839
          %s841 = smul.addr %s21, 2
          %s842 = smul.addr %s841, 64
          %s843 = scalar_lea.hbm %s5, %s842
          %s845 = sshll.u32 %s834, 4
          %s846 = int_to_ptr.vmem [resolvable:$true] %s845
          %848 = dma.vmem_to_hbm [thread:$0]  %s846, 128, %s843, %s831
        $region48: #{tpu_custom_call.1} parent=39 // pred_fallthru
          _
      $region40: #{tpu_custom_call.1} parent=5 // pred_fallthru
        _
      %p849 = scmp.le.s32.totalorder 2, %s16
      // Predicated region
      $region49: #{tpu_custom_call.1} parent=5 // pred_check
        %p850 = pneg %p849
      $region50: #{tpu_custom_call.1} parent=5 // pred_check_branch
        %852 = sbr.rel (%p850) target = $region52
      $region51: #{tpu_custom_call.1} parent=5 // pred_region
        %s853 = ssub.s32 %s16, 2
        // Predicated region
        $region53: #{tpu_custom_call.1} parent=51 // pred_check
          %p854 = pneg %p155
        $region54: #{tpu_custom_call.1} parent=51 // pred_check_branch
          %856 = sbr.rel (%p854) target = $region56
        $region55: #{tpu_custom_call.1} parent=51 // pred_region
          %s857 = sand.u32 %s140, 1
          %s858 = scalar_lea.sflag [#allocation5], %s857
          %s859 = sand.u32 %s140, 1
          %s860 = smul.addr %s859, 8
          %s861 = scalar_lea.vmem [#allocation7], %s860
          %862 = dma.done %s858, 128
        $region56: #{tpu_custom_call.1} parent=51 // pred_fallthru
          _
      $region52: #{tpu_custom_call.1} parent=5 // pred_fallthru
        _
    $region6: #{tpu_custom_call.1} parent=1 // loop_footer
      %s20 = sadd.s32 1, %s16
    $region7: #{tpu_custom_call.1} parent=1 // loop_footer_branch
      %15 = sbr.rel target = $region3
    $region8: #{tpu_custom_call.1} parent=1 // loop_exit
      _
    %863 = vsyncpa [#allocation5], 1
    %s864 = scalar_lea.sflag [#allocation5], 1
    %865 = vsyncpa %s864, 1
    %866 = vsyncpa [#allocation6], 1
    %s867 = scalar_lea.sflag [#allocation6], 1
    %868 = vsyncpa %s867, 1

</llo_original>
